<compile_context>
chip_gen: v5e
topology: v5e:2x2
jax: 0.10.0
libtpu: 0.0.40
codegen_flags: <defaults>
</compile_context>

<pallas_src>
import functools
import math

import jax
import jax.numpy as jnp
from jax.experimental import pallas as pl
from jax.experimental.pallas import tpu as pltpu


_SMALL_L_OUT_BYTES = 512  # below this, fall back to jnp.pad (lane-sparse stores)


def _sublane_multiple(dtype) -> int:
    """Row granularity matching the dtype's sublane packing (8/16/32)."""
    return max(8, 32 // max(1, jnp.dtype(dtype).itemsize))


def _generation_params():
    """(target output-block bytes, vmem_limit_bytes) per TPU generation."""
    kind = ""
    try:
        kind = jax.devices()[0].device_kind.lower()
    except Exception:
        pass
    vmem_cap = None
    try:
        vmem_cap = int(pltpu.get_tpu_info().vmem_capacity_bytes)
    except Exception:
        pass
    if "v5" in kind:
        # 16 MiB scoped-VMEM default and slow HBM: keep 2 MiB blocks.
        target, limit = 2 << 20, 16 << 20
    elif "v6" in kind:
        target, limit = 3 << 20, 32 << 20
    elif "v7" in kind or "7x" in kind or (
        vmem_cap is not None and vmem_cap <= (64 << 20)
    ):
        # 3.2 TB/s HBM: bigger blocks to amortize the ~0.35us/step overhead.
        target, limit = 5 << 20, 28 << 20
    else:
        target, limit = 2 << 20, 16 << 20  # unknown generation: conservative
    if vmem_cap is not None:
        limit = min(limit, vmem_cap // 2)
    return target, limit


def _choose_row_tile(rows, l_out, itemsize, sub, target_bytes):
    """Row tile for the full-L path: ~target_bytes of output per grid step."""
    tm = max(1, target_bytes // max(1, l_out * itemsize))
    tm = max(sub, (tm // sub) * sub)
    if tm < rows:
        return tm
    # tm would cover all rows in one step.  If rows is big enough, split into
    # >=2 blocks so both v7x TensorCores get work and in/out DMAs pipeline.
    if rows >= 2 * sub:
        half = (rows + 1) // 2
        return ((half + sub - 1) // sub) * sub
    return rows


def _zero_pad_full_l_kernel(x_ref, o_ref, *, pad_left, pad_right):
    """One row-block: compose [0s | x | 0s] in registers, single full store."""
    x = x_ref[...]
    parts = []
    if pad_left > 0:
        parts.append(jnp.zeros((x.shape[0], pad_left), dtype=x.dtype))
    parts.append(x)
    if pad_right > 0:
        parts.append(jnp.zeros((x.shape[0], pad_right), dtype=x.dtype))
    o_ref[...] = jnp.concatenate(parts, axis=-1) if len(parts) > 1 else x


def _zero_pad_ltile_kernel(x_prev_ref, x_cur_ref, o_ref, *, pad_left, l_in, tl, srem):
    """One (row-block, L-block): shift the input right by pad_left using two
    adjacent input L-blocks (static slices), then mask the pad columns."""
    j = pl.program_id(1)
    cur = x_cur_ref[...]
    if srem == 0:
        shifted = cur
    else:
        prev = x_prev_ref[...]
        shifted = jnp.concatenate(
            [prev[:, tl - srem:], cur[:, : tl - srem]], axis=-1
        )
    col = j * tl + jax.lax.broadcasted_iota(jnp.int32, shifted.shape, 1)
    valid = (col >= pad_left) & (col < pad_left + l_in)
    o_ref[...] = jnp.where(valid, shifted, jnp.zeros_like(shifted))


def _zero_pad_1d_full_l(x2, pad_left, pad_right, tm, vmem_limit):
    rows, l_in = x2.shape
    l_out = l_in + pad_left + pad_right
    itemsize = jnp.dtype(x2.dtype).itemsize
    kernel = functools.partial(
        _zero_pad_full_l_kernel, pad_left=pad_left, pad_right=pad_right
    )
    return pl.pallas_call(
        kernel,
        out_shape=jax.ShapeDtypeStruct((rows, l_out), x2.dtype),
        grid=(pl.cdiv(rows, tm),),
        in_specs=[pl.BlockSpec((tm, l_in), lambda i: (i, 0))],
        out_specs=pl.BlockSpec((tm, l_out), lambda i: (i, 0)),
        compiler_params=pltpu.CompilerParams(
            dimension_semantics=("parallel",),
            vmem_limit_bytes=int(vmem_limit),
        ),
        cost_estimate=pl.CostEstimate(
            flops=0,
            transcendentals=0,
            bytes_accessed=rows * (l_in + l_out) * itemsize,
        ),
    )(x2)


def _zero_pad_1d_ltiled(x2, pad_left, pad_right, tm, tl, vmem_limit):
    rows, l_in = x2.shape
    l_out = l_in + pad_left + pad_right
    itemsize = jnp.dtype(x2.dtype).itemsize
    n_in_blk = pl.cdiv(l_in, tl)
    sblk, srem = pad_left // tl, pad_left % tl

    def prev_map(i, j):
        return (i, jnp.minimum(jnp.maximum(j - sblk - 1, 0), n_in_blk - 1))

    def cur_map(i, j):
        return (i, jnp.minimum(jnp.maximum(j - sblk, 0), n_in_blk - 1))

    kernel = functools.partial(
        _zero_pad_ltile_kernel, pad_left=pad_left, l_in=l_in, tl=tl, srem=srem
    )
    return pl.pallas_call(
        kernel,
        out_shape=jax.ShapeDtypeStruct((rows, l_out), x2.dtype),
        grid=(pl.cdiv(rows, tm), pl.cdiv(l_out, tl)),
        in_specs=[
            pl.BlockSpec((tm, tl), prev_map),
            pl.BlockSpec((tm, tl), cur_map),
        ],
        out_specs=pl.BlockSpec((tm, tl), lambda i, j: (i, j)),
        compiler_params=pltpu.CompilerParams(
            dimension_semantics=("parallel", "parallel"),
            vmem_limit_bytes=int(vmem_limit),
        ),
        cost_estimate=pl.CostEstimate(
            flops=0,
            transcendentals=0,
            bytes_accessed=rows * (2 * l_in + l_out) * itemsize,
        ),
    )(x2, x2)


def zero_pad_1d(x: jax.Array, pad_left: int, pad_right: int) -> jax.Array:
    """Pallas equivalent of torch.nn.functional.pad(x, (pad_left, pad_right))."""
    # Negative pads crop (same as F.pad); do the crop in the wrapper.
    if pad_left < 0:
        x = x[..., -pad_left:]
        pad_left = 0
    if pad_right < 0:
        x = x[..., : x.shape[-1] + pad_right]
        pad_right = 0

    if pad_left == 0 and pad_right == 0:
        return x  # no-op fast path: skip the HBM round trip entirely

    shape = x.shape
    l_in = shape[-1]
    l_out = l_in + pad_left + pad_right
    rows = math.prod(shape[:-1])
    itemsize = jnp.dtype(x.dtype).itemsize

    # Degenerate / tiny-L dispatch: let XLA pad (fuses into the consumer; a
    # standalone kernel with l_out << 128 lanes would be masked-store bound).
    if rows == 0 or l_in == 0 or l_out * itemsize < _SMALL_L_OUT_BYTES:
        pads = [(0, 0)] * (x.ndim - 1) + [(pad_left, pad_right)]
        return jnp.pad(x, pads)

    x2 = x.reshape(rows, l_in)
    sub = _sublane_multiple(x.dtype)
    target_bytes, vmem_limit = _generation_params()

    # Full-L path if even a minimum-rows block (double-buffered in+out) fits
    # comfortably inside the scoped-VMEM budget; otherwise tile the lane axis.
    full_l_min_bytes = 2 * sub * (l_in + l_out) * itemsize
    if full_l_min_bytes <= vmem_limit // 2:
        tm = _choose_row_tile(rows, l_out, itemsize, sub, target_bytes)
        out2 = _zero_pad_1d_full_l(x2, pad_left, pad_right, tm, vmem_limit)
    else:
        blk_target = min(target_bytes, 2 << 20)  # keep ~6x footprint < 16 MiB
        tl = max(128, (blk_target // (sub * itemsize)) // 128 * 128)
        tl = min(tl, pl.cdiv(l_out, 128) * 128)
        tm = max(sub, (blk_target // (tl * itemsize)) // sub * sub)
        if tm >= rows:
            tm = rows
        out2 = _zero_pad_1d_ltiled(x2, pad_left, pad_right, tm, tl, vmem_limit)

    return out2.reshape(*shape[:-1], l_out)


class ZeroPad1d:
    """Stateless JAX/Pallas equivalent of the PyTorch ZeroPad1d module."""

    def __init__(self, pad_left: int, pad_right: int):
        self.pad_left = pad_left
        self.pad_right = pad_right

    def __call__(self, x: jax.Array) -> jax.Array:
        return zero_pad_1d(x, self.pad_left, self.pad_right)


if __name__ == "__main__":
    key = jax.random.PRNGKey(0)
    k1, k2, k3 = jax.random.split(key, 3)

    # 1) Module-scale demo (tiny l_out -> routed to the fused jnp.pad path).
    x_small = jax.random.normal(k1, (2, 4, 16), dtype=jnp.float32)
    mod = ZeroPad1d(3, 5)
    out_small = jax.block_until_ready(mod(x_small))
    ref_small = jnp.pad(x_small, ((0, 0), (0, 0), (3, 5)))
    assert out_small.shape == (2, 4, 24) and out_small.dtype == x_small.dtype
    assert jnp.array_equal(out_small, ref_small)

    # 2) Pallas full-L streaming path.
    x_med = jax.random.normal(k2, (2, 4, 256), dtype=jnp.float32)
    out_med = jax.block_until_ready(zero_pad_1d(x_med, 3, 5))
    ref_med = jnp.pad(x_med, ((0, 0), (0, 0), (3, 5)))
    assert out_med.shape == (2, 4, 264) and out_med.dtype == x_med.dtype
    assert jnp.array_equal(out_med, ref_med)

    # 3) Pallas long-L (lane-tiled) path, forced small tiles so it runs at
    #    test scale; pad_left spans more than one L tile.
    x_long = jax.random.normal(k3, (16, 1000), dtype=jnp.float32)
    out_long = jax.block_until_ready(
        _zero_pad_1d_ltiled(x_long, 300, 77, tm=8, tl=256, vmem_limit=16 << 20)
    )
    ref_long = jnp.pad(x_long, ((0, 0), (300, 77)))
    assert out_long.shape == (16, 1377) and out_long.dtype == x_long.dtype
    assert jnp.array_equal(out_long, ref_long)

    # 4) Negative pad (crop) + positive pad, Pallas full-L path.
    out_crop = jax.block_until_ready(zero_pad_1d(x_med, -4, 200))
    ref_crop = jnp.pad(x_med[..., 4:], ((0, 0), (0, 0), (0, 200)))
    assert jnp.array_equal(out_crop, ref_crop)

    # 5) No-op fast path.
    out_noop = jax.block_until_ready(zero_pad_1d(x_med, 0, 0))
    assert jnp.array_equal(out_noop, x_med)

    print("KERNEL_OK")
</pallas_src>

<mosaic_0001>
module attributes {stable_mosaic.version = 11 : i64} {
  func.func @_zero_pad_full_l_kernel(%arg0: i32, %arg1: memref<8x256xf32, #tpu.memory_space<vmem>>, %arg2: memref<8x264xf32, #tpu.memory_space<vmem>>) attributes {dimension_semantics = [#tpu.dimension_semantics<parallel>], iteration_bounds = array<i64: 1>, scalar_prefetch = 0 : i64, scratch_operands = 0 : i64, tpu.core_type = #tpu.core_type<tc>, window_params = [{transform_indices = @transform_0, window_bounds = array<i64: 8, 256>}, {transform_indices = @transform_1, window_bounds = array<i64: 8, 264>}]} {
    %c0 = arith.constant 0 : index
    %c0_0 = arith.constant 0 : index
    %0 = vector.load %arg1[%c0, %c0_0] : memref<8x256xf32, #tpu.memory_space<vmem>>, vector<8x256xf32>
    %cst = arith.constant 0.000000e+00 : f32
    %1 = vector.broadcast %cst : f32 to vector<8x3xf32>
    %cst_1 = arith.constant 0.000000e+00 : f32
    %2 = vector.broadcast %cst_1 : f32 to vector<8x5xf32>
    %3 = tpu.concatenate %1, %0, %2 in 1 : vector<8x3xf32>, vector<8x256xf32>, vector<8x5xf32> -> vector<8x264xf32>
    %c0_2 = arith.constant 0 : index
    %c0_3 = arith.constant 0 : index
    %4 = vector.load %arg2[%c0_2, %c0_3] : memref<8x264xf32, #tpu.memory_space<vmem>>, vector<8x264xf32>
    tpu.vector_store %arg2[%c0_2, %c0_3], %3 {strides = array<i32>} : memref<8x264xf32, #tpu.memory_space<vmem>>, vector<8x264xf32>,
    return
  }
  func.func @transform_0(%arg0: i32) -> (i32, i32) {
    %c0_i32 = arith.constant 0 : i32
    %c0_i32_0 = arith.constant 0 : i32
    return %arg0, %c0_i32 : i32, i32
  }
  func.func @transform_1(%arg0: i32) -> (i32, i32) {
    %c0_i32 = arith.constant 0 : i32
    %c0_i32_0 = arith.constant 0 : i32
    return %arg0, %c0_i32 : i32, i32
  }
}

</mosaic_0001>

<llo_original>
// kernel: tpu_custom_call.1
$region0: #{tpu_custom_call.1}
  #allocation0 [shape = 'u32[]', space=smem, size = 0x4, offset = 0x4, fixed_abs, tag = 'smem constant byte address 0x4 - core index']
  #allocation1 [shape = 'u32[72,128]{1,0:T(1,128)}', space=vmem, size = 0x9000, scoped, tag = 'internal scratch']
  %s0 = inlined_call_operand.hbm [shape: f32[8,256], index: 0, kind: input, shape index: {}]
  %s1 = inlined_call_operand.hbm [shape: f32[8,264], index: 1, kind: output, shape index: {}]
  %s2 = sld [smem:[#allocation0]]
  $region18: #{tpu_custom_call.1} parent=0
    _
  %s4 = ssub.s32 1, %s2
  %s5 = scalar_select 0, %s4, %s2
  $region1: #{tpu_custom_call.1} parent=0
    #allocation2 [shape = 'u8[8192]{0}', space=vmem, size = 0x2000, scoped, tag = 'input window, operand 0, single buffered']
    #allocation3 [shape = 's32[1]{0}', space=sflag, size = 0x4, scoped, tag = 'scoped memory for tpu_custom_call.1']
    #allocation4 [shape = 's32[1]{0}', space=sflag, size = 0x4, scoped, tag = 'scoped memory for tpu_custom_call.1']
    #allocation5 [shape = 'u8[12288]{0}', space=vmem, size = 0x3000, scoped, tag = 'output window, operand 0, single buffered']
    %6 = vsyncpa [#allocation3], 0
    %7 = vsyncpa [#allocation4], 0
    // Predicated region
    $region2: #{tpu_custom_call.1} parent=1 // pred_check
      _
    $region3: #{tpu_custom_call.1} parent=1 // pred_check_branch
      %9 = sbr.rel (0) target = $region5
    $region4: #{tpu_custom_call.1} parent=1 // pred_region
      %11 = vsyncadd [#allocation3], 0
      %s13 = sshll.u32 %s0, 4
      %s14 = int_to_ptr.hbm [resolvable:$true] %s13
      %s15 = sshll.u32 [#allocation2], 4
      %s16 = int_to_ptr.vmem [resolvable:$true] %s15
      %18 = dma.hbm_to_vmem [thread:$0]  %s14, 256, %s16, [#allocation3]
    $region5: #{tpu_custom_call.1} parent=1 // pred_fallthru
      _
    // Predicated region
    $region6: #{tpu_custom_call.1} parent=1 // pred_check
      _
    $region7: #{tpu_custom_call.1} parent=1 // pred_check_branch
      %20 = sbr.rel (0) target = $region9
    $region8: #{tpu_custom_call.1} parent=1 // pred_region
      %22 = dma.done [#allocation3], 256
    $region9: #{tpu_custom_call.1} parent=1 // pred_fallthru
      _
    %v23 = vld [vmem:[#allocation2] sm:$0xff]
    %v24 = vld [vmem:[#allocation2 + $0x8] sm:$0xff]
    %27 = vrot.lane.b32.xlu0 %v23, 3
    %v28 = vpop.permute.xlu0 %27
    %29 = vrot.lane.b32.xlu0 %v24, 3
    %v30 = vpop.permute.xlu0 %29
    %vm31 = vcmask 23552
    %v32 = vsel %vm31, %v28, %v30
    %v36 = vsel %vm31, 0.0, %v28
    %v37 = vsel %vm31, %v30, 0.0
    %38 = vst [vmem:[#allocation5] sm:$0xff] %v36
    %39 = vst [vmem:[#allocation5 + $0x8] sm:$0xff] %v32
    %vm40 = vcmask 64512
    %41 = vst.msk [vmem:[#allocation5 + $0x10] sm:$0xff] %vm40, %v37
    // Predicated region
    $region10: #{tpu_custom_call.1} parent=1 // pred_check
      _
    $region11: #{tpu_custom_call.1} parent=1 // pred_check_branch
      %43 = sbr.rel (0) target = $region13
    $region12: #{tpu_custom_call.1} parent=1 // pred_region
      %45 = vsyncadd [#allocation4], 0
      %s47 = sshll.u32 [#allocation5], 4
      %s48 = int_to_ptr.vmem [resolvable:$true] %s47
      %s49 = sshll.u32 %s1, 4
      %s50 = int_to_ptr.hbm [resolvable:$true] %s49
      %52 = dma.vmem_to_hbm [thread:$0]  %s48, 384, %s50, [#allocation4]
    $region13: #{tpu_custom_call.1} parent=1 // pred_fallthru
      _
    // Predicated region
    $region14: #{tpu_custom_call.1} parent=1 // pred_check
      _
    $region15: #{tpu_custom_call.1} parent=1 // pred_check_branch
      %54 = sbr.rel (0) target = $region17
    $region16: #{tpu_custom_call.1} parent=1 // pred_region
      %56 = dma.done [#allocation4], 384
    $region17: #{tpu_custom_call.1} parent=1 // pred_fallthru
      _
    %57 = vsyncpa [#allocation3], 1
    %58 = vsyncpa [#allocation4], 1

</llo_original>
